<compile_context>
chip_gen: v7x
topology: tpu7x:2x2x1
jax: 0.10.0
libtpu: 0.0.40
codegen_flags: <defaults>
</compile_context>

<pallas_src>
import functools

import jax
import jax.numpy as jnp
from jax.experimental import pallas as pl
from jax.experimental.pallas import tpu as pltpu

LANE = 128
SUBLANES = 8
TILE_BYTES = 4 * 1024 * 1024   # per-buffer DMA tile budget (rows derived per dtype)
CHUNK_SPLIT = 8                # in-kernel chunking: temporaries ~ TILE_BYTES/8


def _round_up(x, m):
    return (x + m - 1) // m * m


@functools.lru_cache(maxsize=1)
def _tpu_info():
    try:
        return pltpu.get_tpu_info()
    except Exception:
        return None


@functools.lru_cache(maxsize=1)
def _num_tensorcores():
    """TensorCores per chip; the partial split only pays on multi-TC chips."""
    info = _tpu_info()
    if info is not None:
        for name in ("num_cores", "num_tensorcores", "tensorcore_count",
                     "core_count", "cores_per_chip"):
            try:
                v = int(getattr(info, name))
                if v >= 1:
                    return v
            except (AttributeError, TypeError, ValueError):
                pass
    try:
        kind = jax.devices()[0].device_kind.lower()
    except Exception:
        return 1
    return 2 if any(t in kind for t in ("v7", "7x", "v5p", "v4")) else 1


@functools.lru_cache(maxsize=1)
def _vmem_limit_bytes():
    """Scoped-VMEM request: 3/4 of physical capacity, capped; fallback 48 MiB."""
    info = _tpu_info()
    try:
        cap = int(getattr(info, "vmem_capacity_bytes"))
        if cap > 0:
            return min(cap * 3 // 4, 96 * 1024 * 1024)
    except (AttributeError, TypeError, ValueError):
        pass
    return 48 * 1024 * 1024


def _row_mask(shape, start, n_rows):
    rows = jax.lax.broadcasted_iota(jnp.int32, shape, 0)
    return (start + rows) < n_rows


# ----------------------------- kernels --------------------------------------
def _l1_reduce_kernel(n_rows, n_chunks, need_mask, pred_ref, targ_ref, lacc_ref):
    """weight=None: accumulate sum(|pred - target|) into an (8,128) f32 partial."""
    i = pl.program_id(1)

    @pl.when(i == 0)
    def _():
        lacc_ref[...] = jnp.zeros_like(lacc_ref)

    block_rows = pred_ref.shape[0]
    chunk_rows = block_rows // n_chunks
    blk = pl.program_id(0) * pl.num_programs(1) + i
    for j in range(n_chunks):                    # static unroll; bounds temporaries
        sl = pl.ds(j * chunk_rows, chunk_rows)
        p = pred_ref[sl, :].astype(jnp.float32)
        t = targ_ref[sl, :].astype(jnp.float32)
        d = jnp.abs(p - t)
        if need_mask:                            # kill out-of-bounds garbage rows
            start = blk * block_rows + j * chunk_rows
            d = jnp.where(_row_mask(d.shape, start, n_rows), d, 0.0)
        # (chunk, 128) -> (chunk//8, 8, 128): sum over axis 0 is pure VPU adds
        # (no XLU); the single cross-lane reduce happens in the wrapper.
        lacc_ref[0] += d.reshape(-1, SUBLANES, LANE).sum(axis=0)


def _l1w_reduce_kernel(n_rows, n_chunks, need_mask,
                       pred_ref, targ_ref, w_ref, lacc_ref, wacc_ref):
    """Weighted: accumulate sum(|pred-target| * w) and sum(w) into (8,128) partials."""
    i = pl.program_id(1)

    @pl.when(i == 0)
    def _():
        lacc_ref[...] = jnp.zeros_like(lacc_ref)
        wacc_ref[...] = jnp.zeros_like(wacc_ref)

    block_rows = pred_ref.shape[0]
    chunk_rows = block_rows // n_chunks
    blk = pl.program_id(0) * pl.num_programs(1) + i
    for j in range(n_chunks):
        sl = pl.ds(j * chunk_rows, chunk_rows)
        p = pred_ref[sl, :].astype(jnp.float32)
        t = targ_ref[sl, :].astype(jnp.float32)
        w = w_ref[sl, :].astype(jnp.float32)
        d = jnp.abs(p - t)
        if need_mask:
            start = blk * block_rows + j * chunk_rows
            valid = _row_mask(d.shape, start, n_rows)
            d = jnp.where(valid, d, 0.0)
            w = jnp.where(valid, w, 0.0)
        lacc_ref[0] += (d * w).reshape(-1, SUBLANES, LANE).sum(axis=0)
        wacc_ref[0] += w.reshape(-1, SUBLANES, LANE).sum(axis=0)


def _l1_none_kernel(loss_weight, n_chunks, pred_ref, targ_ref, out_ref):
    """reduction='none', weight=None: loss_weight * |pred - target| in out dtype."""
    block_rows = pred_ref.shape[0]
    chunk_rows = block_rows // n_chunks
    for j in range(n_chunks):
        sl = pl.ds(j * chunk_rows, chunk_rows)
        p = pred_ref[sl, :].astype(jnp.float32)
        t = targ_ref[sl, :].astype(jnp.float32)
        out_ref[sl, :] = (jnp.abs(p - t) * loss_weight).astype(out_ref.dtype)


def _l1w_none_kernel(loss_weight, n_chunks, pred_ref, targ_ref, w_ref, out_ref):
    """reduction='none', weighted: loss_weight * |pred - target| * w in out dtype."""
    block_rows = pred_ref.shape[0]
    chunk_rows = block_rows // n_chunks
    for j in range(n_chunks):
        sl = pl.ds(j * chunk_rows, chunk_rows)
        p = pred_ref[sl, :].astype(jnp.float32)
        t = targ_ref[sl, :].astype(jnp.float32)
        w = w_ref[sl, :].astype(jnp.float32)
        out_ref[sl, :] = (jnp.abs(p - t) * w * loss_weight).astype(out_ref.dtype)


# ----------------------------- wrapper ---------------------------------------
def _as_rows(x):
    """Flatten to a lane-dense (rows, 128) slab; zero extra HBM passes when
    x.size is a multiple of 128 (pure reshape)."""
    flat = x.reshape(-1)
    rem = flat.shape[0] % LANE
    if rem:
        # TODO(synk): rare ragged tail (<128 elems) still costs one pad copy;
        # a manual-DMA tail path could avoid it entirely.
        flat = jnp.pad(flat, (0, LANE - rem))
    return flat.reshape(-1, LANE)


def l1_loss_pallas(pred, target, weight=None, loss_weight=1.0, reduction="mean"):
    """Pallas implementation of L1_Loss.forward (basicsr weighted_loss semantics)."""
    if reduction not in ("none", "mean", "sum"):
        raise ValueError(f"Unsupported reduction mode: {reduction}")

    orig_shape = pred.shape
    total = pred.size

    itemsize = max(1, pred.dtype.itemsize)
    packing = max(SUBLANES, 32 // itemsize)       # 8 f32 / 16 bf16 / 32 int8

    # Inputs stay in native dtype (cast happens in-kernel).
    pred2d = _as_rows(pred)
    targ2d = _as_rows(target)
    w2d = None
    if weight is not None:
        if tuple(weight.shape) == tuple(orig_shape):
            w2d = _as_rows(weight)                # stream full-shape weight directly
        else:
            # TODO(synk): stream compact broadcastable weights (e.g. (N,1,H,W))
            # via an index_map-replicated channel axis instead of materializing
            # the broadcast (one extra pred-sized HBM pass today).
            w2d = _as_rows(jnp.broadcast_to(weight, orig_shape))

    n_rows = pred2d.shape[0]
    if n_rows < packing:
        # Tiny input (< packing*128 elems): one negligible pad keeps tiles legal.
        pad_r = packing - n_rows
        pred2d = jnp.pad(pred2d, ((0, pad_r), (0, 0)))
        targ2d = jnp.pad(targ2d, ((0, pad_r), (0, 0)))
        if w2d is not None:
            w2d = jnp.pad(w2d, ((0, pad_r), (0, 0)))
        n_rows = packing

    # Byte-based, dtype-aware tile: same DMA bytes per grid step for f32/bf16/int8.
    rows_budget = max(packing, (TILE_BYTES // (LANE * itemsize)) // packing * packing)
    block_rows = min(rows_budget, (n_rows // packing) * packing)
    n_blocks = pl.cdiv(n_rows, block_rows)
    n_chunks = CHUNK_SPLIT if block_rows % (CHUNK_SPLIT * packing) == 0 else 1
    vmem_limit = _vmem_limit_bytes()

    if reduction == "none":
        tile_spec = pl.BlockSpec((block_rows, LANE), lambda i: (i, 0))
        if w2d is None:
            kernel = functools.partial(_l1_none_kernel, float(loss_weight), n_chunks)
            operands = (pred2d, targ2d)
            in_specs = [tile_spec, tile_spec]
        else:
            kernel = functools.partial(_l1w_none_kernel, float(loss_weight), n_chunks)
            operands = (pred2d, targ2d, w2d)
            in_specs = [tile_spec, tile_spec, tile_spec]
        out2d = pl.pallas_call(
            kernel,
            out_shape=jax.ShapeDtypeStruct((n_rows, LANE), pred.dtype),
            grid_spec=pltpu.PrefetchScalarGridSpec(
                num_scalar_prefetch=0,
                grid=(n_blocks,),
                in_specs=in_specs,
                out_specs=tile_spec,
            ),
            compiler_params=pltpu.CompilerParams(
                dimension_semantics=("parallel",),
                vmem_limit_bytes=vmem_limit),
        )(*operands)
        out_flat = out2d.reshape(-1)
        if out_flat.shape[0] != total:
            out_flat = out_flat[:total]
        return out_flat.reshape(orig_shape)

    # reduction in {'mean', 'sum'}: per-partial (8,128) f32 vector accumulators.
    num_partials = max(1, min(_num_tensorcores(), n_blocks))
    steps = pl.cdiv(n_blocks, num_partials)
    need_mask = (n_rows % block_rows != 0) or (steps * num_partials != n_blocks)
    last_block = n_blocks - 1

    if steps * num_partials == n_blocks:
        def tile_map(c, i):
            return (c * steps + i, 0)
    else:
        def tile_map(c, i):  # padded steps re-read the last block; mask zeroes them
            return (jnp.minimum(c * steps + i, last_block), 0)

    tile_spec = pl.BlockSpec((block_rows, LANE), tile_map)
    acc_spec = pl.BlockSpec((1, SUBLANES, LANE), lambda c, i: (c, 0, 0))
    acc_shape = jax.ShapeDtypeStruct((num_partials, SUBLANES, LANE), jnp.float32)
    params = pltpu.CompilerParams(
        dimension_semantics=("parallel", "arbitrary"),
        vmem_limit_bytes=vmem_limit)

    if w2d is None:
        lacc = pl.pallas_call(
            functools.partial(_l1_reduce_kernel, n_rows, n_chunks, need_mask),
            out_shape=acc_shape,
            grid_spec=pltpu.PrefetchScalarGridSpec(
                num_scalar_prefetch=0,
                grid=(num_partials, steps),
                in_specs=[tile_spec, tile_spec],
                out_specs=acc_spec,
            ),
            compiler_params=params,
        )(pred2d, targ2d)
        lsum = jnp.sum(lacc)
        denom = jnp.float32(total)
    else:
        lacc, wacc = pl.pallas_call(
            functools.partial(_l1w_reduce_kernel, n_rows, n_chunks, need_mask),
            out_shape=(acc_shape, acc_shape),
            grid_spec=pltpu.PrefetchScalarGridSpec(
                num_scalar_prefetch=0,
                grid=(num_partials, steps),
                in_specs=[tile_spec, tile_spec, tile_spec],
                out_specs=[acc_spec, acc_spec],
            ),
            compiler_params=params,
        )(pred2d, targ2d, w2d)
        lsum = jnp.sum(lacc)
        # basicsr weight_reduce_loss 'mean': denominator is sum of the weight
        # broadcast to the full (N,C,H,W) shape (covers both C>1 and C==1 cases).
        denom = jnp.sum(wacc)

    out = lsum if reduction == "sum" else lsum / denom
    return (jnp.float32(loss_weight) * out).astype(pred.dtype)


# ----------------------------- demo ------------------------------------------
if __name__ == "__main__":
    key = jax.random.PRNGKey(0)
    k1, k2, k3, k4, k5, k6 = jax.random.split(key, 6)

    N, C, H, W = 2, 4, 16, 16
    pred = jax.random.normal(k1, (N, C, H, W), dtype=jnp.float32)
    target = jax.random.normal(k2, (N, C, H, W), dtype=jnp.float32)
    weight = jax.random.uniform(k3, (N, C, H, W), dtype=jnp.float32)
    weight_c1 = jax.random.uniform(k4, (N, 1, H, W), dtype=jnp.float32)

    loss_weight = 1.0

    # default configuration of L1_Loss: loss_weight=1.0, reduction='mean', weight=None
    out_mean = l1_loss_pallas(pred, target, weight=None,
                              loss_weight=loss_weight, reduction="mean")
    out_sum = l1_loss_pallas(pred, target, weight=None,
                             loss_weight=loss_weight, reduction="sum")
    out_none = l1_loss_pallas(pred, target, weight=weight,
                              loss_weight=loss_weight, reduction="none")
    out_wmean = l1_loss_pallas(pred, target, weight=weight,
                               loss_weight=loss_weight, reduction="mean")
    out_wmean_c1 = l1_loss_pallas(pred, target, weight=weight_c1,
                                  loss_weight=loss_weight, reduction="mean")

    # bf16 inputs: native dtype streams through, f32 math in-kernel, bf16 out.
    pred_bf = pred.astype(jnp.bfloat16)
    targ_bf = target.astype(jnp.bfloat16)
    out_none_bf = l1_loss_pallas(pred_bf, targ_bf, weight=None,
                                 loss_weight=loss_weight, reduction="none")

    # ragged shape: exercises the LANE-pad tail + in-kernel row masking path.
    pred_r = jax.random.normal(k5, (2, 3, 15, 15), dtype=jnp.float32)
    targ_r = jax.random.normal(k6, (2, 3, 15, 15), dtype=jnp.float32)
    out_rsum = l1_loss_pallas(pred_r, targ_r, weight=None,
                              loss_weight=loss_weight, reduction="sum")
    out_rnone = l1_loss_pallas(pred_r, targ_r, weight=None,
                               loss_weight=loss_weight, reduction="none")

    jax.block_until_ready((out_mean, out_sum, out_none, out_wmean,
                           out_wmean_c1, out_none_bf, out_rsum, out_rnone))

    # reference checks (plain JAX)
    ref_abs = jnp.abs(pred - target)
    assert jnp.allclose(out_mean, jnp.mean(ref_abs), rtol=1e-5, atol=1e-5)
    assert jnp.allclose(out_sum, jnp.sum(ref_abs), rtol=1e-5, atol=1e-4)
    assert jnp.allclose(out_none, ref_abs * weight, rtol=1e-5, atol=1e-5)
    assert jnp.allclose(out_wmean, jnp.sum(ref_abs * weight) / jnp.sum(weight),
                        rtol=1e-5, atol=1e-5)
    # basicsr single-channel-weight mean: denom = weight.sum() * C
    assert jnp.allclose(out_wmean_c1,
                        jnp.sum(ref_abs * weight_c1) / (jnp.sum(weight_c1) * C),
                        rtol=1e-5, atol=1e-5)
    assert jnp.allclose(out_none_bf.astype(jnp.float32),
                        jnp.abs(pred_bf - targ_bf).astype(jnp.float32),
                        rtol=1e-2, atol=1e-2)
    ref_abs_r = jnp.abs(pred_r - targ_r)
    assert jnp.allclose(out_rsum, jnp.sum(ref_abs_r), rtol=1e-5, atol=1e-4)
    assert jnp.allclose(out_rnone, ref_abs_r, rtol=1e-5, atol=1e-5)

    print("KERNEL_OK")
</pallas_src>

<mosaic_0001>
module attributes {stable_mosaic.version = 11 : i64} {
  func.func @_l1_reduce_kernel(%arg0: i32, %arg1: i32, %arg2: memref<16x128xf32, #tpu.memory_space<vmem>>, %arg3: memref<16x128xf32, #tpu.memory_space<vmem>>, %arg4: memref<1x8x128xf32, #tpu.memory_space<vmem>>) attributes {dimension_semantics = [#tpu.dimension_semantics<parallel>, #tpu.dimension_semantics<arbitrary>], iteration_bounds = array<i64: 1, 1>, scalar_prefetch = 0 : i64, scratch_operands = 0 : i64, tpu.core_type = #tpu.core_type<tc>, window_params = [{transform_indices = @transform_0, window_bounds = array<i64: 16, 128>}, {transform_indices = @transform_1, window_bounds = array<i64: 16, 128>}, {transform_indices = @transform_2, window_bounds = array<i64: 1, 8, 128>}]} {
    %c0_i32 = arith.constant 0 : i32
    %0 = arith.cmpi eq, %arg1, %c0_i32 : i32
    %1 = arith.extui %0 : i1 to i32
    %c0_i32_0 = arith.constant 0 : i32
    %2 = arith.cmpi ne, %1, %c0_i32_0 : i32
    scf.if %2 {
      %cst_10 = arith.constant 0.000000e+00 : f32
      %15 = vector.broadcast %cst_10 : f32 to vector<1x8x128xf32>
      %c0_11 = arith.constant 0 : index
      %c0_12 = arith.constant 0 : index
      %c0_13 = arith.constant 0 : index
      %16 = vector.load %arg4[%c0_11, %c0_12, %c0_13] : memref<1x8x128xf32, #tpu.memory_space<vmem>>, vector<1x8x128xf32>
      tpu.vector_store %arg4[%c0_11, %c0_12, %c0_13], %15 {strides = array<i32>} : memref<1x8x128xf32, #tpu.memory_space<vmem>>, vector<1x8x128xf32>,
    } else {
    }
    %c0 = arith.constant 0 : index
    %c0_1 = arith.constant 0 : index
    %3 = vector.load %arg2[%c0, %c0_1] : memref<16x128xf32, #tpu.memory_space<vmem>>, vector<16x128xf32>
    %c0_2 = arith.constant 0 : index
    %c0_3 = arith.constant 0 : index
    %4 = vector.load %arg3[%c0_2, %c0_3] : memref<16x128xf32, #tpu.memory_space<vmem>>, vector<16x128xf32>
    %5 = arith.subf %3, %4 : vector<16x128xf32>
    %6 = math.absf %5 : vector<16x128xf32>
    %c0_4 = arith.constant 0 : index
    %c0_5 = arith.constant 0 : index
    %c0_6 = arith.constant 0 : index
    %7 = vector.load %arg4[%c0_4, %c0_5, %c0_6] : memref<1x8x128xf32, #tpu.memory_space<vmem>>, vector<1x8x128xf32>
    %8 = vector.shape_cast %7 : vector<1x8x128xf32> to vector<8x128xf32>
    %9 = vector.shape_cast %6 : vector<16x128xf32> to vector<2x8x128xf32>
    %cst = arith.constant dense<0.000000e+00> : vector<8x128xf32>
    %10 = vector.multi_reduction <add>, %9, %cst [0] : vector<2x8x128xf32> to vector<8x128xf32>
    %11 = arith.addf %8, %10 : vector<8x128xf32>
    %c0_7 = arith.constant 0 : index
    %c0_8 = arith.constant 0 : index
    %c0_9 = arith.constant 0 : index
    %12 = vector.load %arg4[%c0_7, %c0_8, %c0_9] : memref<1x8x128xf32, #tpu.memory_space<vmem>>, vector<1x8x128xf32>
    %13 = vector.shape_cast %12 : vector<1x8x128xf32> to vector<8x128xf32>
    %14 = vector.shape_cast %11 : vector<8x128xf32> to vector<1x8x128xf32>
    tpu.vector_store %arg4[%c0_7, %c0_8, %c0_9], %14 {strides = array<i32>} : memref<1x8x128xf32, #tpu.memory_space<vmem>>, vector<1x8x128xf32>,
    return
  }
  func.func @transform_0(%arg0: i32, %arg1: i32) -> (i32, i32) {
    %c1_i32 = arith.constant 1 : i32
    %0 = arith.muli %arg0, %c1_i32 : i32
    %1 = arith.addi %0, %arg1 : i32
    %c0_i32 = arith.constant 0 : i32
    %c0_i32_0 = arith.constant 0 : i32
    return %1, %c0_i32 : i32, i32
  }
  func.func @transform_1(%arg0: i32, %arg1: i32) -> (i32, i32) {
    %c1_i32 = arith.constant 1 : i32
    %0 = arith.muli %arg0, %c1_i32 : i32
    %1 = arith.addi %0, %arg1 : i32
    %c0_i32 = arith.constant 0 : i32
    %c0_i32_0 = arith.constant 0 : i32
    return %1, %c0_i32 : i32, i32
  }
  func.func @transform_2(%arg0: i32, %arg1: i32) -> (i32, i32, i32) {
    %c0_i32 = arith.constant 0 : i32
    %c0_i32_0 = arith.constant 0 : i32
    %c0_i32_1 = arith.constant 0 : i32
    return %arg0, %c0_i32, %c0_i32_0 : i32, i32, i32
  }
}

</mosaic_0001>

<llo_original>
// kernel: tpu_custom_call.1
$region0: #{tpu_custom_call.1}
  #allocation0 [shape = 'u32[]', space=smem, size = 0x4, offset = 0x4, fixed_abs, tag = 'smem constant byte address 0x4 - core index']
  #allocation1 [shape = 'u32[144,128]{1,0:T(1,128)}', space=vmem, size = 0x12000, scoped, tag = 'internal scratch']
  %s0 = inlined_call_operand.hbm [shape: f32[16,128], index: 0, kind: input, shape index: {}]
  %s1 = inlined_call_operand.hbm [shape: f32[16,128], index: 1, kind: input, shape index: {}]
  %s2 = inlined_call_operand.hbm [shape: f32[1,8,128], index: 2, kind: output, shape index: {}]
  %s3 = sld [smem:[#allocation0]]
  $region30: #{tpu_custom_call.1} parent=0
    _
  %s5 = ssub.s32 1, %s3
  %s6 = scalar_select 0, %s5, %s3
  $region1: #{tpu_custom_call.1} parent=0
    #allocation2 [shape = 'u8[8192]{0}', space=vmem, size = 0x2000, scoped, tag = 'input window, operand 0, single buffered']
    #allocation3 [shape = 's32[1]{0}', space=sflag, size = 0x4, scoped, tag = 'scoped memory for tpu_custom_call.1']
    #allocation4 [shape = 's32[1]{0}', space=sflag, size = 0x4, scoped, tag = 'scoped memory for tpu_custom_call.1']
    #allocation5 [shape = 'u8[8192]{0}', space=vmem, size = 0x2000, scoped, tag = 'input window, operand 1, single buffered']
    #allocation6 [shape = 's32[1]{0}', space=sflag, size = 0x4, scoped, tag = 'scoped memory for tpu_custom_call.1']
    #allocation7 [shape = 'u8[4096]{0}', space=vmem, size = 0x1000, scoped, tag = 'output window, operand 0, single buffered']
    %7 = vsyncpa [#allocation3], 0
    %8 = vsyncpa [#allocation6], 0
    %9 = vsyncpa [#allocation4], 0
    // Predicated region
    $region2: #{tpu_custom_call.1} parent=1 // pred_check
      _
    $region3: #{tpu_custom_call.1} parent=1 // pred_check_branch
      %11 = sbr.rel (0) target = $region5
    $region4: #{tpu_custom_call.1} parent=1 // pred_region
      %s12 = sadd.s32 0, 0
      %s13 = smul.u32 2, %s12
      %s15 = ssub.s32 256, 256
      %16 = vsyncadd [#allocation3], %s15
      %s17 = smul.addr %s13, 128
      %s18 = scalar_lea.hbm %s0, %s17
      %s19 = sshll.u32 [#allocation2], 4
      %s20 = int_to_ptr.vmem [resolvable:$true] %s19
      %25 = dma.hbm_to_vmem [thread:$0]  %s18, 256, %s20, [#allocation3], 128, 128, 8
    $region5: #{tpu_custom_call.1} parent=1 // pred_fallthru
      _
    // Predicated region
    $region6: #{tpu_custom_call.1} parent=1 // pred_check
      _
    $region7: #{tpu_custom_call.1} parent=1 // pred_check_branch
      %27 = sbr.rel (0) target = $region9
    $region8: #{tpu_custom_call.1} parent=1 // pred_region
      %s28 = sadd.s32 0, 0
      %s29 = smul.u32 2, %s28
      %s31 = ssub.s32 256, 256
      %32 = vsyncadd [#allocation6], %s31
      %s33 = smul.addr %s29, 128
      %s34 = scalar_lea.hbm %s1, %s33
      %s35 = sshll.u32 [#allocation5], 4
      %s36 = int_to_ptr.vmem [resolvable:$true] %s35
      %41 = dma.hbm_to_vmem [thread:$0]  %s34, 256, %s36, [#allocation6], 128, 128, 8
    $region9: #{tpu_custom_call.1} parent=1 // pred_fallthru
      _
    // Predicated region
    $region10: #{tpu_custom_call.1} parent=1 // pred_check
      _
    $region11: #{tpu_custom_call.1} parent=1 // pred_check_branch
      %43 = sbr.rel (0) target = $region13
    $region12: #{tpu_custom_call.1} parent=1 // pred_region
      %44 = dma.done [#allocation3], 256
    $region13: #{tpu_custom_call.1} parent=1 // pred_fallthru
      _
    // Predicated region
    $region14: #{tpu_custom_call.1} parent=1 // pred_check
      _
    $region15: #{tpu_custom_call.1} parent=1 // pred_check_branch
      %46 = sbr.rel (0) target = $region17
    $region16: #{tpu_custom_call.1} parent=1 // pred_region
      %47 = dma.done [#allocation6], 256
    $region17: #{tpu_custom_call.1} parent=1 // pred_fallthru
      _
    %s48 = sadd.s32 0, 0
    %s49 = smul.u32 2, %s48
    %s50 = sadd.s32 0, 0
    %s51 = smul.u32 2, %s50
    %p52 = scmp.eq.s32.totalorder 0, 0
    // Predicated region
    $region18: #{tpu_custom_call.1} parent=1 // pred_check
      %p53 = pneg %p52
    $region19: #{tpu_custom_call.1} parent=1 // pred_check_branch
      %55 = sbr.rel (%p53) target = $region21
    $region20: #{tpu_custom_call.1} parent=1 // pred_region
      %56 = vst [vmem:[#allocation7] sm:$0xff] 0.0
    $region21: #{tpu_custom_call.1} parent=1 // pred_fallthru
      _
    %v57 = vld [vmem:[#allocation2] sm:$0xff]
    %v58 = vld [vmem:[#allocation2 + $0x8] sm:$0xff]
    %v59 = vld [vmem:[#allocation5] sm:$0xff]
    %v60 = vld [vmem:[#allocation5 + $0x8] sm:$0xff]
    %v61 = vsub.f32 %v57, %v59
    %v62 = vsub.f32 %v58, %v60
    %v63 = vand.u32 2147483647, %v61
    %v64 = vand.u32 2147483647, %v62
    %v65 = vld [vmem:[#allocation7] sm:$0xff]
    %v66 = vadd.f32 %v63, %v64
    %v67 = vadd.f32 %v65, %v66
    %68 = vst [vmem:[#allocation7] sm:$0xff] %v67
    // Predicated region
    $region22: #{tpu_custom_call.1} parent=1 // pred_check
      _
    $region23: #{tpu_custom_call.1} parent=1 // pred_check_branch
      %70 = sbr.rel (0) target = $region25
    $region24: #{tpu_custom_call.1} parent=1 // pred_region
      %s72 = ssub.s32 128, 128
      %73 = vsyncadd [#allocation4], %s72
      %s75 = sshll.u32 [#allocation7], 4
      %s76 = int_to_ptr.vmem [resolvable:$true] %s75
      %78 = dma.vmem_to_hbm [thread:$0]  %s76, 128, %s2, [#allocation4]
    $region25: #{tpu_custom_call.1} parent=1 // pred_fallthru
      _
    // Predicated region
    $region26: #{tpu_custom_call.1} parent=1 // pred_check
      _
    $region27: #{tpu_custom_call.1} parent=1 // pred_check_branch
      %80 = sbr.rel (0) target = $region29
    $region28: #{tpu_custom_call.1} parent=1 // pred_region
      %81 = dma.done [#allocation4], 128
    $region29: #{tpu_custom_call.1} parent=1 // pred_fallthru
      _
    %82 = vsyncpa [#allocation3], 1
    %83 = vsyncpa [#allocation6], 1
    %84 = vsyncpa [#allocation4], 1

</llo_original>
